<compile_context>
chip_gen: v7x
topology: tpu7x:2x2x1
jax: 0.10.0
libtpu: 0.0.40
codegen_flags: <defaults>
</compile_context>

<pallas_src>
import jax
import jax.numpy as jnp
from jax.experimental import pallas as pl
from jax.experimental.pallas import tpu as pltpu

_LANE = 128
_SUBLANE = 8
_INFLIGHT = 32          # concurrent per-row gather DMAs per token block
_HEADROOM = 8 << 20     # VMEM slack left for compiler-internal scratch


def _round_up(x: int, m: int) -> int:
    return ((x + m - 1) // m) * m


def _vmem_capacity_bytes() -> int:
    """Chip-aware VMEM capacity (v5e/v6e: 128 MiB, v7x: 64 MiB per TensorCore)."""
    try:
        return int(pltpu.get_tpu_info().vmem_capacity_bytes)
    except Exception:
        return 64 << 20   # conservative default (v7x per-TC)


_BUFFERED1_OK: bool | None = None


def _single_buffer_supported() -> bool:
    """Probe once whether pipeline_mode=pl.Buffered(1) lowers on this stack."""
    global _BUFFERED1_OK
    if _BUFFERED1_OK is None:
        def _probe(x_ref, o_ref):
            o_ref[...] = x_ref[...] + 1.0
        try:
            y = pl.pallas_call(
                _probe,
                out_shape=jax.ShapeDtypeStruct((_SUBLANE, _LANE), jnp.float32),
                grid=(1,),
                in_specs=[pl.BlockSpec((_SUBLANE, _LANE), lambda i: (0, 0),
                                       pipeline_mode=pl.Buffered(1))],
                out_specs=pl.BlockSpec((_SUBLANE, _LANE), lambda i: (0, 0)),
            )(jnp.zeros((_SUBLANE, _LANE), jnp.float32))
            jax.block_until_ready(y)
            _BUFFERED1_OK = bool(jnp.all(y == 1.0))
        except Exception:
            _BUFFERED1_OK = False
    return _BUFFERED1_OK


# ---------------- kernel 1: one-hot MXU matmul (tiny vocab, resident table) --

def _embedding_onehot_kernel(ids_ref, w_ref, out_ref):
    # ids_ref : VMEM (tok_blk, 1) int32
    # w_ref   : VMEM (vocab_pad, d_pad), resident (constant index_map)
    # out_ref : VMEM (tok_blk, d_pad)
    tok_blk = out_ref.shape[0]
    vocab_pad = w_ref.shape[0]
    iota = jax.lax.broadcasted_iota(jnp.int32, (tok_blk, vocab_pad), 1)
    one_hot = (iota == ids_ref[...]).astype(w_ref.dtype)        # (tok_blk, vocab_pad)
    out_ref[...] = jnp.dot(one_hot, w_ref[...],
                           preferred_element_type=jnp.float32).astype(out_ref.dtype)


# ---------------- kernel 2: per-row DMA gather (VMEM- or HBM-resident table) -

def _embedding_dma_gather_kernel(ids_ref, w_ref, out_ref, sem):
    # ids_ref : SMEM (padded_tokens,) int32  (scalar-prefetched)
    # w_ref   : table ref, either VMEM (resident block) or HBM (pl.ANY)
    # out_ref : VMEM (tok_blk, d_pad)
    # sem     : DMA semaphores, shape (_INFLIGHT,)
    tok_blk = out_ref.shape[0]
    base = pl.program_id(0) * tok_blk
    window = sem.shape[0]

    def row_copy(r):
        # DMA the selected table row straight into the output block
        # (no dynamic vector loads, no sublane concatenation).
        return pltpu.make_async_copy(
            w_ref.at[pl.ds(ids_ref[base + r], 1), :],
            out_ref.at[pl.ds(r, 1), :],
            sem.at[r % window])

    # Prime a window of in-flight row fetches.
    @pl.loop(0, min(window, tok_blk))
    def _(r):
        row_copy(r).start()

    # Steady state: wait row r, immediately refill its semaphore slot.
    @pl.loop(0, tok_blk)
    def _(r):
        row_copy(r).wait()

        @pl.when(r + window < tok_blk)
        def _():
            row_copy(r + window).start()


# ------------------------------- wrapper -------------------------------------

def embedding_forward(token_ids: jax.Array, weights: jax.Array, *,
                      tok_blk: int | None = None,
                      mode: str | None = None) -> jax.Array:
    """token_ids: [batch, seq] int; weights: [vocab, d_model] float.
    Returns [batch, seq, d_model] in weights.dtype.
    mode: None (auto) | "one_hot" | "resident_gather" | "hbm_gather".
    """
    batch, seq = token_ids.shape
    vocab, d_model = weights.shape
    num_tokens = batch * seq
    dsize = jnp.dtype(weights.dtype).itemsize

    vmem_cap = _vmem_capacity_bytes()
    budget = vmem_cap - _HEADROOM
    single_buf = _single_buffer_supported()
    tbl_factor = 1 if single_buf else 2      # resident table buffer count

    d_pad = _round_up(d_model, _LANE)

    # Token block: large (amortizes ~0.35us/grid-step), multiple of 8, clamped
    # to the (padded) token count.
    if tok_blk is None:
        tok_blk = 512 if d_pad <= 512 else 256
    tok_blk = min(int(tok_blk), _round_up(num_tokens, _SUBLANE))
    tok_blk = _round_up(max(tok_blk, _SUBLANE), _SUBLANE)
    padded_tokens = _round_up(num_tokens, tok_blk)
    grid = (padded_tokens // tok_blk,)

    out_blk_bytes = 2 * tok_blk * d_pad * dsize            # double-buffered output

    # ---- path selection -----------------------------------------------------
    onehot_thresh = 256 if dsize >= 4 else 512             # MXU-vs-bandwidth crossover
    vocab_mxu = _round_up(vocab, 2 * _LANE)                 # full-depth 256-deep MXU passes
    onehot_bytes = (tbl_factor * vocab_mxu * d_pad * dsize
                    + out_blk_bytes + tok_blk * vocab_mxu * max(dsize, 4))
    resident_bytes = (tbl_factor * _round_up(vocab, _SUBLANE) * d_pad * dsize
                      + out_blk_bytes)
    gather_traffic = num_tokens * d_pad * dsize             # HBM bytes the HBM path reads

    if mode is None:
        if vocab <= onehot_thresh and onehot_bytes <= budget:
            mode = "one_hot"
        elif (resident_bytes <= budget
              and gather_traffic >= 2 * vocab * d_pad * dsize):
            # Residency only pays when the per-row gather would read more HBM
            # than (two copies of) the table; on v7x megacore each of the two
            # TensorCores fetches/holds its own copy of the resident table.
            mode = "resident_gather"
        else:
            mode = "hbm_gather"
    if mode not in ("one_hot", "resident_gather", "hbm_gather"):
        raise ValueError(f"unknown mode: {mode}")

    # Token ids: clamp to [0, vocab) (torch raises on OOB; an unchecked dynamic
    # read/DMA would silently fetch a wrong row), pad the tail with id 0.
    # TODO(synk): no in-kernel error reporting to mirror torch's raise on OOB ids.
    flat_ids = jnp.clip(token_ids.reshape(-1).astype(jnp.int32), 0, vocab - 1)
    if padded_tokens != num_tokens:
        flat_ids = jnp.pad(flat_ids, (0, padded_tokens - num_tokens))

    # Table padding (layout plumbing; a real model would store d_model as a
    # 128-multiple so this is a no-op and the HBM path never copies the table).
    vocab_rows = vocab_mxu if mode == "one_hot" else vocab
    w_pad = weights
    if (vocab_rows, d_pad) != (vocab, d_model):
        w_pad = jnp.pad(weights, ((0, vocab_rows - vocab), (0, d_pad - d_model)))

    needed = {
        "one_hot": onehot_bytes,
        "resident_gather": resident_bytes,
        "hbm_gather": out_blk_bytes,
    }[mode] + (4 << 20)
    vmem_limit = int(min(max(needed, 32 << 20), vmem_cap))

    compiler_params = pltpu.CompilerParams(
        dimension_semantics=("parallel",),   # token blocks are independent
        vmem_limit_bytes=vmem_limit,
    )
    out_shape = jax.ShapeDtypeStruct((padded_tokens, d_pad), weights.dtype)

    def _resident_spec(rows, index_map):
        # Constant index_map -> fetched once; single buffer when supported.
        if single_buf:
            return pl.BlockSpec((rows, d_pad), index_map,
                                pipeline_mode=pl.Buffered(1))
        return pl.BlockSpec((rows, d_pad), index_map)

    if mode == "one_hot":
        ids2d = flat_ids.reshape(padded_tokens, 1)
        out_flat = pl.pallas_call(
            _embedding_onehot_kernel,
            out_shape=out_shape,
            grid_spec=pltpu.PrefetchScalarGridSpec(
                num_scalar_prefetch=0,
                grid=grid,
                in_specs=[
                    pl.BlockSpec((tok_blk, 1), lambda i: (i, 0)),
                    _resident_spec(vocab_rows, lambda i: (0, 0)),
                ],
                out_specs=pl.BlockSpec((tok_blk, d_pad), lambda i: (i, 0)),
            ),
            compiler_params=compiler_params,
        )(ids2d, w_pad)
    else:
        if mode == "resident_gather":
            table_spec = _resident_spec(vocab_rows, lambda i, ids: (0, 0))
        else:  # hbm_gather: table never leaves HBM; only touched rows are DMA'd
            table_spec = pl.BlockSpec(memory_space=pl.ANY)
        out_flat = pl.pallas_call(
            _embedding_dma_gather_kernel,
            out_shape=out_shape,
            grid_spec=pltpu.PrefetchScalarGridSpec(
                num_scalar_prefetch=1,          # flat ids -> SMEM
                grid=grid,
                in_specs=[table_spec],
                out_specs=pl.BlockSpec((tok_blk, d_pad), lambda i, ids: (i, 0)),
                scratch_shapes=[pltpu.SemaphoreType.DMA((_INFLIGHT,))],
            ),
            compiler_params=compiler_params,
        )(flat_ids, w_pad)

    out = out_flat
    if padded_tokens != num_tokens or d_pad != d_model:
        out = out[:num_tokens, :d_model]        # free when shapes already padded
    return out.reshape(batch, seq, d_model)


if __name__ == "__main__":
    key = jax.random.PRNGKey(0)
    k_w, k_ids, k_w2, k_ids2 = jax.random.split(key, 4)

    # Config 1: small shapes consistent with the module defaults.
    num_embeddings, embedding_dim = 64, 32
    batch, seq = 2, 8

    # Deterministic init matching torch.nn.init.trunc_normal_(mean=0, std=1, a=-3, b=3)
    weights = jax.random.truncated_normal(
        k_w, -3.0, 3.0, (num_embeddings, embedding_dim), dtype=jnp.float32)
    token_ids = jax.random.randint(
        k_ids, (batch, seq), minval=0, maxval=num_embeddings, dtype=jnp.int32)
    ref = weights[token_ids]

    out_auto = embedding_forward(token_ids, weights)                          # auto -> one-hot MXU
    out_res = embedding_forward(token_ids, weights, mode="resident_gather")   # VMEM-resident DMA gather
    out_hbm = embedding_forward(token_ids, weights, mode="hbm_gather")        # HBM DMA gather
    jax.block_until_ready((out_auto, out_res, out_hbm))
    assert out_auto.shape == (batch, seq, embedding_dim)
    assert jnp.allclose(out_auto, ref), "Pallas embedding (one-hot MXU) mismatch"
    assert jnp.allclose(out_res, ref), "Pallas embedding (resident DMA gather) mismatch"
    assert jnp.allclose(out_hbm, ref), "Pallas embedding (HBM DMA gather) mismatch"

    # Config 2: padding (vocab/d_model not lane multiples) + multi-block grid.
    vocab2, d2, b2, s2 = 200, 96, 4, 37
    w2 = jax.random.truncated_normal(k_w2, -3.0, 3.0, (vocab2, d2), dtype=jnp.float32)
    ids2 = jax.random.randint(k_ids2, (b2, s2), minval=0, maxval=vocab2, dtype=jnp.int32)
    ref2 = w2[ids2]
    o2a = embedding_forward(ids2, w2, tok_blk=64)                             # auto -> one-hot MXU
    o2b = embedding_forward(ids2, w2, tok_blk=64, mode="resident_gather")
    o2c = embedding_forward(ids2, w2, tok_blk=64, mode="hbm_gather")
    jax.block_until_ready((o2a, o2b, o2c))
    assert jnp.allclose(o2a, ref2), "Pallas embedding (one-hot, padded) mismatch"
    assert jnp.allclose(o2b, ref2), "Pallas embedding (resident gather, padded) mismatch"
    assert jnp.allclose(o2c, ref2), "Pallas embedding (HBM gather, padded) mismatch"

    print("KERNEL_OK")
</pallas_src>

<mosaic_0001>
module attributes {stable_mosaic.version = 11 : i64} {
  func.func @_probe(%arg0: i32, %arg1: memref<8x128xf32, #tpu.memory_space<vmem>>, %arg2: memref<8x128xf32, #tpu.memory_space<vmem>>) attributes {dimension_semantics = [#tpu.dimension_semantics<arbitrary>], iteration_bounds = array<i64: 1>, scalar_prefetch = 0 : i64, scratch_operands = 0 : i64, tpu.core_type = #tpu.core_type<tc>, window_params = [{pipeline_mode = #tpu.pipeline_mode<synchronous>, transform_indices = @transform_0, window_bounds = array<i64: 8, 128>}, {pipeline_mode = #tpu.pipeline_mode<synchronous>, transform_indices = @transform_1, window_bounds = array<i64: 8, 128>}]} {
    %c0 = arith.constant 0 : index
    %c0_0 = arith.constant 0 : index
    %0 = vector.load %arg1[%c0, %c0_0] : memref<8x128xf32, #tpu.memory_space<vmem>>, vector<8x128xf32>
    %cst = arith.constant 1.000000e+00 : f32
    %1 = vector.broadcast %cst : f32 to vector<8x128xf32>
    %2 = arith.addf %0, %1 : vector<8x128xf32>
    %c0_1 = arith.constant 0 : index
    %c0_2 = arith.constant 0 : index
    %3 = vector.load %arg2[%c0_1, %c0_2] : memref<8x128xf32, #tpu.memory_space<vmem>>, vector<8x128xf32>
    tpu.vector_store %arg2[%c0_1, %c0_2], %2 {strides = array<i32>} : memref<8x128xf32, #tpu.memory_space<vmem>>, vector<8x128xf32>,
    return
  }
  func.func @transform_0(%arg0: i32) -> (i32, i32) {
    %c0_i32 = arith.constant 0 : i32
    %c0_i32_0 = arith.constant 0 : i32
    %c0_i32_1 = arith.constant 0 : i32
    return %c0_i32, %c0_i32_0 : i32, i32
  }
  func.func @transform_1(%arg0: i32) -> (i32, i32) {
    %c0_i32 = arith.constant 0 : i32
    %c0_i32_0 = arith.constant 0 : i32
    %c0_i32_1 = arith.constant 0 : i32
    return %c0_i32, %c0_i32_0 : i32, i32
  }
}

module attributes {stable_mosaic.version = 11 : i64} {
  func.func @_embedding_onehot_kernel(%arg0: i32, %arg1: memref<16x1xi32, #tpu.memory_space<vmem>>, %arg2: memref<256x128xf32, #tpu.memory_space<vmem>>, %arg3: memref<16x128xf32, #tpu.memory_space<vmem>>) attributes {dimension_semantics = [#tpu.dimension_semantics<parallel>], iteration_bounds = array<i64: 1>, scalar_prefetch = 0 : i64, scratch_operands = 0 : i64, tpu.core_type = #tpu.core_type<tc>, window_params = [{transform_indices = @transform_0, window_bounds = array<i64: 16, 1>}, {pipeline_mode = #tpu.pipeline_mode<synchronous>, transform_indices = @transform_1, window_bounds = array<i64: 256, 128>}, {transform_indices = @transform_2, window_bounds = array<i64: 16, 128>}]} {
    %0 = tpu.iota {dimensions = array<i32: 1>} : vector<16x256xi32>
    %c0 = arith.constant 0 : index
    %c0_0 = arith.constant 0 : index
    %1 = vector.load %arg1[%c0, %c0_0] : memref<16x1xi32, #tpu.memory_space<vmem>>, vector<16x1xi32>
    %2 = vector.broadcast %1 : vector<16x1xi32> to vector<16x256xi32>
    %3 = arith.cmpi eq, %0, %2 : vector<16x256xi32>
    %4 = arith.extui %3 : vector<16x256xi1> to vector<16x256xi32>
    %5 = arith.sitofp %4 : vector<16x256xi32> to vector<16x256xf32>
    %c0_1 = arith.constant 0 : index
    %c0_2 = arith.constant 0 : index
    %6 = vector.load %arg2[%c0_1, %c0_2] : memref<256x128xf32, #tpu.memory_space<vmem>>, vector<256x128xf32>
    %cst = arith.constant dense<0.000000e+00> : vector<16x128xf32>
    %7 = tpu.matmul %5, %6, %cst {dimension_numbers = #tpu.dot_dimension_numbers<[1], [0], [0], [1], [0, 0, 1, 1], [], []>} : vector<16x256xf32>, vector<256x128xf32>, vector<16x128xf32> -> vector<16x128xf32>
    %c0_3 = arith.constant 0 : index
    %c0_4 = arith.constant 0 : index
    %8 = vector.load %arg3[%c0_3, %c0_4] : memref<16x128xf32, #tpu.memory_space<vmem>>, vector<16x128xf32>
    tpu.vector_store %arg3[%c0_3, %c0_4], %7 {strides = array<i32>} : memref<16x128xf32, #tpu.memory_space<vmem>>, vector<16x128xf32>,
    return
  }
  func.func @transform_0(%arg0: i32) -> (i32, i32) {
    %c0_i32 = arith.constant 0 : i32
    %c0_i32_0 = arith.constant 0 : i32
    return %arg0, %c0_i32 : i32, i32
  }
  func.func @transform_1(%arg0: i32) -> (i32, i32) {
    %c0_i32 = arith.constant 0 : i32
    %c0_i32_0 = arith.constant 0 : i32
    %c0_i32_1 = arith.constant 0 : i32
    return %c0_i32, %c0_i32_0 : i32, i32
  }
  func.func @transform_2(%arg0: i32) -> (i32, i32) {
    %c0_i32 = arith.constant 0 : i32
    %c0_i32_0 = arith.constant 0 : i32
    return %arg0, %c0_i32 : i32, i32
  }
}

</mosaic_0001>

<llo_original>
// kernel: tpu_custom_call.1
$region0: #{tpu_custom_call.1}
  #allocation0 [shape = 'u32[]', space=smem, size = 0x4, offset = 0x4, fixed_abs, tag = 'smem constant byte address 0x4 - core index']
  #allocation1 [shape = 'u32[144,128]{1,0:T(1,128)}', space=vmem, size = 0x12000, scoped, tag = 'internal scratch']
  %s0 = inlined_call_operand.hbm [shape: f32[8,128], index: 0, kind: input, shape index: {}]
  %s1 = inlined_call_operand.hbm [shape: f32[8,128], index: 1, kind: output, shape index: {}]
  %s2 = sld [smem:[#allocation0]]
  $region18: #{tpu_custom_call.1} parent=0
    _
  %s4 = ssub.s32 1, %s2
  %s5 = scalar_select 0, %s4, %s2
  $region1: #{tpu_custom_call.1} parent=0
    #allocation2 [shape = 'u8[4096]{0}', space=vmem, size = 0x1000, scoped, tag = 'input window, operand 0, single buffered']
    #allocation3 [shape = 's32[1]{0}', space=sflag, size = 0x4, scoped, tag = 'scoped memory for tpu_custom_call.1']
    #allocation4 [shape = 's32[1]{0}', space=sflag, size = 0x4, scoped, tag = 'scoped memory for tpu_custom_call.1']
    #allocation5 [shape = 'u8[4096]{0}', space=vmem, size = 0x1000, scoped, tag = 'output window, operand 0, single buffered']
    %6 = vsyncpa [#allocation3], 0
    %7 = vsyncpa [#allocation4], 0
    // Predicated region
    $region2: #{tpu_custom_call.1} parent=1 // pred_check
      _
    $region3: #{tpu_custom_call.1} parent=1 // pred_check_branch
      %9 = sbr.rel (0) target = $region5
    $region4: #{tpu_custom_call.1} parent=1 // pred_region
      %s11 = ssub.s32 128, 128
      %12 = vsyncadd [#allocation3], %s11
      %s14 = sshll.u32 [#allocation2], 4
      %s15 = int_to_ptr.vmem [resolvable:$true] %s14
      %17 = dma.hbm_to_vmem [thread:$0]  %s0, 128, %s15, [#allocation3]
    $region5: #{tpu_custom_call.1} parent=1 // pred_fallthru
      _
    // Predicated region
    $region6: #{tpu_custom_call.1} parent=1 // pred_check
      _
    $region7: #{tpu_custom_call.1} parent=1 // pred_check_branch
      %19 = sbr.rel (0) target = $region9
    $region8: #{tpu_custom_call.1} parent=1 // pred_region
      %20 = dma.done [#allocation3], 128
    $region9: #{tpu_custom_call.1} parent=1 // pred_fallthru
      _
    %v21 = vld [vmem:[#allocation2] sm:$0xff]
    %v22 = vadd.f32 %v21, 1.0
    %23 = vst [vmem:[#allocation5] sm:$0xff] %v22
    // Predicated region
    $region10: #{tpu_custom_call.1} parent=1 // pred_check
      _
    $region11: #{tpu_custom_call.1} parent=1 // pred_check_branch
      %25 = sbr.rel (0) target = $region13
    $region12: #{tpu_custom_call.1} parent=1 // pred_region
      %s27 = ssub.s32 128, 128
      %28 = vsyncadd [#allocation4], %s27
      %s30 = sshll.u32 [#allocation5], 4
      %s31 = int_to_ptr.vmem [resolvable:$true] %s30
      %33 = dma.vmem_to_hbm [thread:$0]  %s31, 128, %s1, [#allocation4]
    $region13: #{tpu_custom_call.1} parent=1 // pred_fallthru
      _
    // Predicated region
    $region14: #{tpu_custom_call.1} parent=1 // pred_check
      _
    $region15: #{tpu_custom_call.1} parent=1 // pred_check_branch
      %35 = sbr.rel (0) target = $region17
    $region16: #{tpu_custom_call.1} parent=1 // pred_region
      %36 = dma.done [#allocation4], 128
    $region17: #{tpu_custom_call.1} parent=1 // pred_fallthru
      _
    %37 = vsyncpa [#allocation3], 1
    %38 = vsyncpa [#allocation4], 1

// kernel: tpu_custom_call.1
$region0: #{tpu_custom_call.1}
  #allocation0 [shape = 'u32[]', space=smem, size = 0x4, offset = 0x4, fixed_abs, tag = 'smem constant byte address 0x4 - core index']
  #allocation1 [shape = 'u32[144,128]{1,0:T(1,128)}', space=vmem, size = 0x12000, scoped, tag = 'internal scratch']
  %s0 = inlined_call_operand.vmem [shape: s32[16,1], index: 0, kind: input, shape index: {}]
  %s1 = inlined_call_operand.hbm [shape: f32[256,128], index: 1, kind: input, shape index: {}]
  %s2 = inlined_call_operand.hbm [shape: f32[16,128], index: 2, kind: output, shape index: {}]
  %s3 = sld [smem:[#allocation0]]
  $region22: #{tpu_custom_call.1} parent=0
    _
  %s5 = ssub.s32 1, %s3
  %s6 = scalar_select 0, %s5, %s3
  $region1: #{tpu_custom_call.1} parent=0
    #allocation2 [shape = 'u8[131072]{0}', space=vmem, size = 0x20000, scoped, tag = 'input window, operand 1, single buffered']
    #allocation3 [shape = 's32[1]{0}', space=sflag, size = 0x4, scoped, tag = 'scoped memory for tpu_custom_call.1']
    #allocation4 [shape = 's32[1]{0}', space=sflag, size = 0x4, scoped, tag = 'scoped memory for tpu_custom_call.1']
    #allocation5 [shape = 'u8[8192]{0}', space=vmem, size = 0x2000, scoped, tag = 'output window, operand 0, single buffered']
    %7 = vsyncpa [#allocation3], 0
    %8 = vsyncpa [#allocation4], 0
    // Predicated region
    $region2: #{tpu_custom_call.1} parent=1 // pred_check
      _
    $region3: #{tpu_custom_call.1} parent=1 // pred_check_branch
      %10 = sbr.rel (0) target = $region5
    $region4: #{tpu_custom_call.1} parent=1 // pred_region
      _
    $region5: #{tpu_custom_call.1} parent=1 // pred_fallthru
      _
    // Predicated region
    $region6: #{tpu_custom_call.1} parent=1 // pred_check
      _
    $region7: #{tpu_custom_call.1} parent=1 // pred_check_branch
      %12 = sbr.rel (0) target = $region9
    $region8: #{tpu_custom_call.1} parent=1 // pred_region
      %s14 = ssub.s32 4096, 4096
      %15 = vsyncadd [#allocation3], %s14
      %s16 = sshll.u32 [#allocation2], 4
      %s17 = int_to_ptr.vmem [resolvable:$true] %s16
      %22 = dma.hbm_to_vmem [thread:$0]  %s1, 4096, %s17, [#allocation3], 128, 128, 8
    $region9: #{tpu_custom_call.1} parent=1 // pred_fallthru
      _
    // Predicated region
    $region10: #{tpu_custom_call.1} parent=1 // pred_check
      _
    $region11: #{tpu_custom_call.1} parent=1 // pred_check_branch
      %24 = sbr.rel (0) target = $region13
    $region12: #{tpu_custom_call.1} parent=1 // pred_region
      %25 = dma.done [#allocation3], 4096
    $region13: #{tpu_custom_call.1} parent=1 // pred_fallthru
      _
    %v26 = vlaneseq
    %v27 = vand.u32 %v26, 127
    %v28 = vadd.s32 %v27, 128
    %v29 = vld [vmem:[%s0] sm:$0xff]
    %v30 = vld [vmem:[%s0 + $0x8] sm:$0xff]
    %31 = vset.pattern.permute.xlu0 0
    %32 = vperm.xlu0 %31, %v29
    %v33 = vpop.permute.xlu0 %32
    %34 = vset.pattern.permute.xlu0 0
    %35 = vperm.xlu0 %34, %v30
    %v36 = vpop.permute.xlu0 %35
    %vm37 = vcmp.eq.s32.totalorder %v27, %v33
    %vm38 = vcmp.eq.s32.totalorder %v28, %v33
    %vm39 = vcmp.eq.s32.totalorder %v27, %v36
    %vm40 = vcmp.eq.s32.totalorder %v28, %v36
    %v41 = vsel %vm37, 1, 0
    %v42 = vsel %vm38, 1, 0
    %v43 = vsel %vm39, 1, 0
    %v44 = vsel %vm40, 1, 0
    %v45 = vcvt.s32.f32 %v41
    %v46 = vcvt.s32.f32 %v42
    %v47 = vcvt.s32.f32 %v43
    %v48 = vcvt.s32.f32 %v44
    %v49 = vld [vmem:[#allocation2] sm:$0xff]
    %v50 = vld [vmem:[#allocation2 + $0x8] sm:$0xff]
    %v51 = vld [vmem:[#allocation2 + $0x10] sm:$0xff]
    %v52 = vld [vmem:[#allocation2 + $0x18] sm:$0xff]
    %v53 = vld [vmem:[#allocation2 + $0x20] sm:$0xff]
    %v54 = vld [vmem:[#allocation2 + $0x28] sm:$0xff]
    %v55 = vld [vmem:[#allocation2 + $0x30] sm:$0xff]
    %v56 = vld [vmem:[#allocation2 + $0x38] sm:$0xff]
    %v57 = vld [vmem:[#allocation2 + $0x40] sm:$0xff]
    %v58 = vld [vmem:[#allocation2 + $0x48] sm:$0xff]
    %v59 = vld [vmem:[#allocation2 + $0x50] sm:$0xff]
    %v60 = vld [vmem:[#allocation2 + $0x58] sm:$0xff]
    %v61 = vld [vmem:[#allocation2 + $0x60] sm:$0xff]
    %v62 = vld [vmem:[#allocation2 + $0x68] sm:$0xff]
    %v63 = vld [vmem:[#allocation2 + $0x70] sm:$0xff]
    %v64 = vld [vmem:[#allocation2 + $0x78] sm:$0xff]
    %v65 = vld [vmem:[#allocation2 + $0x80] sm:$0xff]
    %v66 = vld [vmem:[#allocation2 + $0x88] sm:$0xff]
    %v67 = vld [vmem:[#allocation2 + $0x90] sm:$0xff]
    %v68 = vld [vmem:[#allocation2 + $0x98] sm:$0xff]
    %v69 = vld [vmem:[#allocation2 + $0xa0] sm:$0xff]
    %v70 = vld [vmem:[#allocation2 + $0xa8] sm:$0xff]
    %v71 = vld [vmem:[#allocation2 + $0xb0] sm:$0xff]
    %v72 = vld [vmem:[#allocation2 + $0xb8] sm:$0xff]
    %v73 = vld [vmem:[#allocation2 + $0xc0] sm:$0xff]
    %v74 = vld [vmem:[#allocation2 + $0xc8] sm:$0xff]
    %v75 = vld [vmem:[#allocation2 + $0xd0] sm:$0xff]
    %v76 = vld [vmem:[#allocation2 + $0xd8] sm:$0xff]
    %v77 = vld [vmem:[#allocation2 + $0xe0] sm:$0xff]
    %v78 = vld [vmem:[#allocation2 + $0xe8] sm:$0xff]
    %v79 = vld [vmem:[#allocation2 + $0xf0] sm:$0xff]
    %v80 = vld [vmem:[#allocation2 + $0xf8] sm:$0xff]
    %81 = vmatprep.subr.mxu0 0.0
    %82 = vmatpush1.msra.mxu0 %v49
    %83 = vmatprep.subr.mxu0 0.0
    %84 = vmatpush1.msra.mxu0 %v50
    %85 = vmatprep.subr.mxu0 0.0
    %86 = vmatpush1.msra.mxu0 %v51
    %87 = vmatprep.subr.mxu0 0.0
    %88 = vmatpush1.msra.mxu0 %v52
    %89 = vmatprep.subr.mxu0 0.0
    %90 = vmatpush1.msra.mxu0 %v53
    %91 = vmatprep.subr.mxu0 0.0
    %92 = vmatpush1.msra.mxu0 %v54
    %93 = vmatprep.subr.mxu0 0.0
    %94 = vmatpush1.msra.mxu0 %v55
    %95 = vmatprep.subr.mxu0 0.0
    %96 = vmatpush1.msra.mxu0 %v56
    %97 = vmatprep.subr.mxu0 0.0
    %98 = vmatpush1.msra.mxu0 %v57
    %99 = vmatprep.subr.mxu0 0.0
    %100 = vmatpush1.msra.mxu0 %v58
    %101 = vmatprep.subr.mxu0 0.0
    %102 = vmatpush1.msra.mxu0 %v59
    %103 = vmatprep.subr.mxu0 0.0
    %104 = vmatpush1.msra.mxu0 %v60
    %105 = vmatprep.subr.mxu0 0.0
    %106 = vmatpush1.msra.mxu0 %v61
    %107 = vmatprep.subr.mxu0 0.0
    %108 = vmatpush1.msra.mxu0 %v62
    %109 = vmatprep.subr.mxu0 0.0
    %110 = vmatpush1.msra.mxu0 %v63
    %111 = vmatprep.subr.mxu0 0.0
    %112 = vmatpush1.msra.mxu0 %v64
    %113 = vmatprep.subr.mxu0 0.0
    %114 = vmatpush1.msra.mxu0 %v65
    %115 = vmatprep.subr.mxu0 0.0
    %116 = vmatpush1.msra.mxu0 %v66
    %117 = vmatprep.subr.mxu0 0.0
    %118 = vmatpush1.msra.mxu0 %v67
    %119 = vmatprep.subr.mxu0 0.0
    %120 = vmatpush1.msra.mxu0 %v68
    %121 = vmatprep.subr.mxu0 0.0
    %122 = vmatpush1.msra.mxu0 %v69
    %123 = vmatprep.subr.mxu0 0.0
    %124 = vmatpush1.msra.mxu0 %v70
    %125 = vmatprep.subr.mxu0 0.0
    %126 = vmatpush1.msra.mxu0 %v71
    %127 = vmatprep.subr.mxu0 0.0
    %128 = vmatpush1.msra.mxu0 %v72
    %129 = vmatprep.subr.mxu0 0.0
    %130 = vmatpush1.msra.mxu0 %v73
    %131 = vmatprep.subr.mxu0 0.0
    %132 = vmatpush1.msra.mxu0 %v74
    %133 = vmatprep.subr.mxu0 0.0
    %134 = vmatpush1.msra.mxu0 %v75
    %135 = vmatprep.subr.mxu0 0.0
    %136 = vmatpush1.msra.mxu0 %v76
    %137 = vmatprep.subr.mxu0 0.0
    %138 = vmatpush1.msra.mxu0 %v77
    %139 = vmatprep.subr.mxu0 0.0
    %140 = vmatpush1.msra.mxu0 %v78
    %141 = vmatprep.subr.mxu0 0.0
    %142 = vmatpush1.msra.mxu0 %v79
    %143 = vmatprep.subr.mxu0 0.0
    %144 = vmatpush1.msra.mxu0 %v80
    %145 = vmatprep.mubr.f32.mxu0 %v46
    %146 = vmatmul.mubr.f32.gmra.mrb[0].mxu0 %v45
    %v147 = vpop.f32.mrb[0].mxu0
    %v148 = vadd.f32 0.0, %v147
    %v149 = vpop.f32.mrb[0].mxu0
    %150 = vmatprep.mubr.f32.mxu0 %v48
    %151 = vmatmul.mubr.f32.gmra.mrb[0].mxu0 %v47
    %v152 = vpop.f32.mrb[0].mxu0
    %v153 = vadd.f32 0.0, %v152
    %v154 = vpop.f32.mrb[0].mxu0
    %155 = vdwg.mxu0
    %156 = vst [vmem:[#allocation5] sm:$0xff] %v148
    %157 = vst [vmem:[#allocation5 + $0x8] sm:$0xff] %v153
    // Predicated region
    $region14: #{tpu_custom_call.1} parent=1 // pred_check
      _
    $region15: #{tpu_custom_call.1} parent=1 // pred_check_branch
      %159 = sbr.rel (0) target = $region17
    $region16: #{tpu_custom_call.1} parent=1 // pred_region
      %s161 = ssub.s32 256, 256
      %162 = vsyncadd [#allocation4], %s161
      %s163 = sshll.u32 [#allocation5], 4
      %s164 = int_to_ptr.vmem [resolvable:$true] %s163
      %169 = dma.vmem_to_hbm [thread:$0]  %s164, 256, %s2, [#allocation4], 128, 128, 8
    $region17: #{tpu_custom_call.1} parent=1 // pred_fallthru
      _
    // Predicated region
    $region18: #{tpu_custom_call.1} parent=1 // pred_check
      _
    $region19: #{tpu_custom_call.1} parent=1 // pred_check_branch
      %171 = sbr.rel (0) target = $region21
    $region20: #{tpu_custom_call.1} parent=1 // pred_region
      %172 = dma.done [#allocation4], 256
    $region21: #{tpu_custom_call.1} parent=1 // pred_fallthru
      _
    %173 = vsyncpa [#allocation3], 1
    %174 = vsyncpa [#allocation4], 1

</llo_original>
